<compile_context>
chip_gen: v7x
topology: tpu7x:2x2x1
jax: 0.10.0
libtpu: 0.0.40
codegen_flags: <defaults>
</compile_context>

<pallas_src>
import jax
import jax.numpy as jnp
from jax.experimental import pallas as pl
from jax.experimental.pallas import tpu as pltpu


def _self_critical_kernel(end_id_ref, nrows_ref, diversity_ref,   # SMEM scalars
                          sample_ref, logp_ref, reward_ref,       # VMEM (TB, T)
                          loss_ref,                               # VMEM (1, 1)
                          num_ref, den_ref):                      # VMEM scratch (1, 1)
    i = pl.program_id(0)

    @pl.when(i == 0)
    def _init():
        num_ref[...] = jnp.zeros_like(num_ref)
        den_ref[...] = jnp.zeros_like(den_ref)

    sample = sample_ref[...]          # (TB, T) int32
    logp = logp_ref[...]              # (TB, T) f32
    reward = reward_ref[...]          # (TB, T) f32
    TB, T = sample.shape

    # create_mask(): 1 up to and including the first <end>; all ones if none.
    t_idx = jax.lax.broadcasted_iota(jnp.int32, (TB, T), 1)
    is_end = sample == end_id_ref[0]
    first_end = jnp.min(jnp.where(is_end, t_idx, T), axis=1, keepdims=True)  # (TB, 1)

    # Zero out padded batch rows (grid may over-cover the true batch size).
    row_idx = i * TB + jax.lax.broadcasted_iota(jnp.int32, (TB, T), 0)
    mask = jnp.where((t_idx <= first_end) & (row_idx < nrows_ref[0]), 1.0, 0.0)

    num_ref[...] += jnp.sum(logp * reward * mask, keepdims=True)
    den_ref[...] += jnp.sum(mask, keepdims=True)

    @pl.when(i == pl.num_programs(0) - 1)
    def _finalize():
        accuracy = -(num_ref[...] / den_ref[...])
        loss_ref[...] = accuracy + diversity_ref[0]


def self_critical_with_diversity_loss(sample, sample_log_probs, reward,
                                      diversity, end_token_id, *, batch_tile=8):
    """Pallas-backed SelfCriticalWithDiversityLoss.forward.  Scalar f32 loss."""
    B, T = sample.shape
    assert sample_log_probs.shape == (B, T) and reward.shape == (B, T)

    sample = jnp.asarray(sample, dtype=jnp.int32)
    logp = jnp.asarray(sample_log_probs, dtype=jnp.float32)
    reward = jnp.asarray(reward, dtype=jnp.float32)

    tb = min(batch_tile, B)
    n_tiles = (B + tb - 1) // tb
    b_pad = n_tiles * tb
    if b_pad != B:
        pad = ((0, b_pad - B), (0, 0))
        sample = jnp.pad(sample, pad)
        logp = jnp.pad(logp, pad)
        reward = jnp.pad(reward, pad)

    end_id_arr = jnp.asarray([end_token_id], dtype=jnp.int32)
    nrows_arr = jnp.asarray([B], dtype=jnp.int32)
    diversity_arr = jnp.asarray([diversity], dtype=jnp.float32)

    cost = pl.CostEstimate(
        flops=6 * b_pad * T,
        transcendentals=0,
        bytes_accessed=3 * b_pad * T * 4 + 3 * 4 + 4,
    )

    out = pl.pallas_call(
        _self_critical_kernel,
        out_shape=jax.ShapeDtypeStruct((1, 1), jnp.float32),
        grid=(n_tiles,),
        in_specs=[
            pl.BlockSpec(memory_space=pltpu.MemorySpace.SMEM),   # end token id
            pl.BlockSpec(memory_space=pltpu.MemorySpace.SMEM),   # valid batch rows
            pl.BlockSpec(memory_space=pltpu.MemorySpace.SMEM),   # diversity scalar
            pl.BlockSpec((tb, T), lambda i: (i, 0)),             # sample ids
            pl.BlockSpec((tb, T), lambda i: (i, 0)),             # sample log probs
            pl.BlockSpec((tb, T), lambda i: (i, 0)),             # reward
        ],
        out_specs=pl.BlockSpec((1, 1), lambda i: (0, 0)),
        scratch_shapes=[pltpu.VMEM((1, 1), jnp.float32),         # numerator acc
                        pltpu.VMEM((1, 1), jnp.float32)],        # mask-sum acc
        compiler_params=pltpu.CompilerParams(
            dimension_semantics=("arbitrary",)),  # reduction axis (accumulators)
        cost_estimate=cost,
    )(end_id_arr, nrows_arr, diversity_arr, sample, logp, reward)
    return out[0, 0]


# ----------------------- host-side helpers (string code) -----------------------

def _decode_caption(token_ids, end_id, skip_ids=()):
    """Stand-in for word_ids_to_words(): ids -> word strings, truncated at <end>.
    # TODO(synk): the real pipeline decodes with `vocab`; no Pallas equivalent."""
    words = []
    for tok in token_ids:
        tok = int(tok)
        if tok == end_id:
            break
        if tok in skip_ids:
            continue
        words.append("w%d" % tok)
    return words


def diversity_loss(captions):
    """FACE distinct 1-4 gram diversity term (negative), as in the module."""
    unigram, bigram, trigram, cuatrigram = set(), set(), set(), set()
    n_tokens = 0
    for cap in captions:
        n_tokens += len(cap)
        unigram.update(cap)
        bigram.update(tuple(cap[i:i + 2]) for i in range(len(cap) - 1))
        trigram.update(tuple(cap[i:i + 3]) for i in range(len(cap) - 2))
        cuatrigram.update(tuple(cap[i:i + 4]) for i in range(len(cap) - 3))
    d1 = len(unigram) / n_tokens
    d2 = len(bigram) / n_tokens
    d3 = len(trigram) / n_tokens
    d4 = len(cuatrigram) / n_tokens
    return -(d1 + d2 + d3 + d4)


def _reference_loss(sample, logp, reward, diversity, end_id):
    """Pure-JAX reference of the on-device math (for a correctness check)."""
    is_end = (sample == end_id).astype(jnp.float32)
    excl = jnp.cumsum(is_end, axis=1) - is_end
    mask = (excl == 0).astype(jnp.float32)
    accuracy = -jnp.sum(logp * reward * mask) / jnp.sum(mask)
    return accuracy + diversity


if __name__ == "__main__":
    B, T, V = 16, 16, 32
    START_ID, END_ID, PAD_ID = 1, 2, 0

    key = jax.random.PRNGKey(0)
    k1, k2, k3, k4 = jax.random.split(key, 4)

    # Sampled caption token ids: <start> first, some rows terminate with <end>.
    sample = jax.random.randint(k1, (B, T), 3, V, dtype=jnp.int32)
    sample = sample.at[:, 0].set(START_ID)
    end_pos = jax.random.randint(k4, (B,), 2, T, dtype=jnp.int32)
    has_end = (jnp.arange(B) % 2 == 0)          # half the rows have an <end>
    sample = jnp.where(
        has_end[:, None] & (jnp.arange(T)[None, :] == end_pos[:, None]),
        END_ID, sample)

    sample_log_probs = -jnp.abs(jax.random.normal(k2, (B, T), dtype=jnp.float32))

    # TODO(synk): get_self_critical_reward() needs the CIDEr-D scorer (host-side
    # string metric); the per-sequence advantage is taken as a precomputed tensor.
    scores = jax.random.normal(k3, (B,), dtype=jnp.float32)
    reward = jnp.repeat(scores[:, None], T, axis=1)

    # TODO(synk): get_caps() / diversity() operate on decoded caption strings;
    # computed on host and fed to the kernel as a scalar.
    caps = [_decode_caption(row_ids, END_ID, skip_ids=(START_ID, PAD_ID))
            for row_ids in jax.device_get(sample)]
    diversity = diversity_loss(caps)

    loss = self_critical_with_diversity_loss(
        sample, sample_log_probs, reward, diversity, END_ID, batch_tile=8)
    loss = jax.block_until_ready(loss)

    ref = _reference_loss(sample, sample_log_probs, reward, diversity, END_ID)
    assert jnp.allclose(loss, ref, rtol=1e-4, atol=1e-4), (loss, ref)

    print("KERNEL_OK")
</pallas_src>

<mosaic_0001>
module attributes {stable_mosaic.version = 11 : i64} {
  func.func @_self_critical_kernel(%arg0: i32, %arg1: memref<1xi32, #tpu.memory_space<smem>>, %arg2: memref<1xi32, #tpu.memory_space<smem>>, %arg3: memref<1xf32, #tpu.memory_space<smem>>, %arg4: memref<8x16xi32, #tpu.memory_space<vmem>>, %arg5: memref<8x16xf32, #tpu.memory_space<vmem>>, %arg6: memref<8x16xf32, #tpu.memory_space<vmem>>, %arg7: memref<1x1xf32, #tpu.memory_space<vmem>>, %arg8: memref<1x1xf32, #tpu.memory_space<vmem>>, %arg9: memref<1x1xf32, #tpu.memory_space<vmem>>) attributes {dimension_semantics = [#tpu.dimension_semantics<arbitrary>], iteration_bounds = array<i64: 2>, scalar_prefetch = 0 : i64, scratch_operands = 2 : i64, tpu.core_type = #tpu.core_type<tc>, window_params = [{transform_indices = @transform_0, window_bounds = array<i64: 1>}, {transform_indices = @transform_1, window_bounds = array<i64: 1>}, {transform_indices = @transform_2, window_bounds = array<i64: 1>}, {transform_indices = @transform_3, window_bounds = array<i64: 8, 16>}, {transform_indices = @transform_4, window_bounds = array<i64: 8, 16>}, {transform_indices = @transform_5, window_bounds = array<i64: 8, 16>}, {pipeline_mode = #tpu.pipeline_mode<synchronous>, transform_indices = @transform_6, window_bounds = array<i64: 1, 1>}]} {
    %c0_i32 = arith.constant 0 : i32
    %0 = arith.cmpi eq, %arg0, %c0_i32 : i32
    %1 = arith.extui %0 : i1 to i32
    %c0_i32_0 = arith.constant 0 : i32
    %2 = arith.cmpi ne, %1, %c0_i32_0 : i32
    scf.if %2 {
      %cst_21 = arith.constant 0.000000e+00 : f32
      %48 = vector.broadcast %cst_21 : f32 to vector<1x1xf32>
      %c0_22 = arith.constant 0 : index
      %c0_23 = arith.constant 0 : index
      %49 = vector.load %arg8[%c0_22, %c0_23] : memref<1x1xf32, #tpu.memory_space<vmem>>, vector<1x1xf32>
      tpu.vector_store %arg8[%c0_22, %c0_23], %48 {strides = array<i32>} : memref<1x1xf32, #tpu.memory_space<vmem>>, vector<1x1xf32>,
      %cst_24 = arith.constant 0.000000e+00 : f32
      %50 = vector.broadcast %cst_24 : f32 to vector<1x1xf32>
      %c0_25 = arith.constant 0 : index
      %c0_26 = arith.constant 0 : index
      %51 = vector.load %arg9[%c0_25, %c0_26] : memref<1x1xf32, #tpu.memory_space<vmem>>, vector<1x1xf32>
      tpu.vector_store %arg9[%c0_25, %c0_26], %50 {strides = array<i32>} : memref<1x1xf32, #tpu.memory_space<vmem>>, vector<1x1xf32>,
    } else {
    }
    %c0 = arith.constant 0 : index
    %c0_1 = arith.constant 0 : index
    %3 = vector.load %arg4[%c0, %c0_1] : memref<8x16xi32, #tpu.memory_space<vmem>>, vector<8x16xi32>
    %c0_2 = arith.constant 0 : index
    %c0_3 = arith.constant 0 : index
    %4 = vector.load %arg5[%c0_2, %c0_3] : memref<8x16xf32, #tpu.memory_space<vmem>>, vector<8x16xf32>
    %c0_4 = arith.constant 0 : index
    %c0_5 = arith.constant 0 : index
    %5 = vector.load %arg6[%c0_4, %c0_5] : memref<8x16xf32, #tpu.memory_space<vmem>>, vector<8x16xf32>
    %6 = tpu.iota {dimensions = array<i32: 1>} : vector<8x16xi32>
    %c0_6 = arith.constant 0 : index
    %7 = memref.load %arg1[%c0_6] : memref<1xi32, #tpu.memory_space<smem>>
    %8 = vector.broadcast %7 : i32 to vector<8x16xi32>
    %9 = arith.cmpi eq, %3, %8 : vector<8x16xi32>
    %c16_i32 = arith.constant 16 : i32
    %10 = vector.broadcast %c16_i32 : i32 to vector<8x16xi32>
    %11 = arith.select %9, %6, %10 : vector<8x16xi1>, vector<8x16xi32>
    %cst = arith.constant dense<2147483647> : vector<8xi32>
    %12 = vector.multi_reduction <minsi>, %11, %cst [1] : vector<8x16xi32> to vector<8xi32>
    %13 = vector.shape_cast %12 : vector<8xi32> to vector<8x1xi32>
    %c8_i32 = arith.constant 8 : i32
    %14 = arith.muli %arg0, %c8_i32 : i32
    %15 = tpu.iota {dimensions = array<i32: 0>} : vector<8x16xi32>
    %16 = vector.broadcast %14 : i32 to vector<8x16xi32>
    %17 = arith.addi %16, %15 : vector<8x16xi32>
    %18 = vector.broadcast %13 : vector<8x1xi32> to vector<8x16xi32>
    %19 = arith.cmpi sle, %6, %18 : vector<8x16xi32>
    %c0_7 = arith.constant 0 : index
    %20 = memref.load %arg2[%c0_7] : memref<1xi32, #tpu.memory_space<smem>>
    %21 = vector.broadcast %20 : i32 to vector<8x16xi32>
    %22 = arith.cmpi slt, %17, %21 : vector<8x16xi32>
    %23 = arith.andi %19, %22 : vector<8x16xi1>
    %cst_8 = arith.constant 1.000000e+00 : f32
    %cst_9 = arith.constant 0.000000e+00 : f32
    %24 = vector.broadcast %cst_8 : f32 to vector<8x16xf32>
    %25 = vector.broadcast %cst_9 : f32 to vector<8x16xf32>
    %26 = arith.select %23, %24, %25 : vector<8x16xi1>, vector<8x16xf32>
    %c0_10 = arith.constant 0 : index
    %c0_11 = arith.constant 0 : index
    %27 = vector.load %arg8[%c0_10, %c0_11] : memref<1x1xf32, #tpu.memory_space<vmem>>, vector<1x1xf32>
    %28 = arith.mulf %4, %5 : vector<8x16xf32>
    %29 = arith.mulf %28, %26 : vector<8x16xf32>
    %30 = vector.shape_cast %29 : vector<8x16xf32> to vector<1x8x16xf32>
    %cst_12 = arith.constant dense<0.000000e+00> : vector<1xf32>
    %31 = vector.multi_reduction <add>, %30, %cst_12 [1, 2] : vector<1x8x16xf32> to vector<1xf32>
    %32 = vector.shape_cast %31 : vector<1xf32> to vector<1x1x1xf32>
    %33 = vector.extract %32[0, 0, 0] : f32 from vector<1x1x1xf32>
    %34 = vector.broadcast %33 : f32 to vector<1x1xf32>
    %35 = arith.addf %27, %34 : vector<1x1xf32>
    %c0_13 = arith.constant 0 : index
    %c0_14 = arith.constant 0 : index
    %36 = vector.load %arg8[%c0_13, %c0_14] : memref<1x1xf32, #tpu.memory_space<vmem>>, vector<1x1xf32>
    tpu.vector_store %arg8[%c0_13, %c0_14], %35 {strides = array<i32>} : memref<1x1xf32, #tpu.memory_space<vmem>>, vector<1x1xf32>,
    %c0_15 = arith.constant 0 : index
    %c0_16 = arith.constant 0 : index
    %37 = vector.load %arg9[%c0_15, %c0_16] : memref<1x1xf32, #tpu.memory_space<vmem>>, vector<1x1xf32>
    %38 = vector.shape_cast %26 : vector<8x16xf32> to vector<1x8x16xf32>
    %cst_17 = arith.constant dense<0.000000e+00> : vector<1xf32>
    %39 = vector.multi_reduction <add>, %38, %cst_17 [1, 2] : vector<1x8x16xf32> to vector<1xf32>
    %40 = vector.shape_cast %39 : vector<1xf32> to vector<1x1x1xf32>
    %41 = vector.extract %40[0, 0, 0] : f32 from vector<1x1x1xf32>
    %42 = vector.broadcast %41 : f32 to vector<1x1xf32>
    %43 = arith.addf %37, %42 : vector<1x1xf32>
    %c0_18 = arith.constant 0 : index
    %c0_19 = arith.constant 0 : index
    %44 = vector.load %arg9[%c0_18, %c0_19] : memref<1x1xf32, #tpu.memory_space<vmem>>, vector<1x1xf32>
    tpu.vector_store %arg9[%c0_18, %c0_19], %43 {strides = array<i32>} : memref<1x1xf32, #tpu.memory_space<vmem>>, vector<1x1xf32>,
    %c1_i32 = arith.constant 1 : i32
    %45 = arith.cmpi eq, %arg0, %c1_i32 : i32
    %46 = arith.extui %45 : i1 to i32
    %c0_i32_20 = arith.constant 0 : i32
    %47 = arith.cmpi ne, %46, %c0_i32_20 : i32
    scf.if %47 {
      %c0_21 = arith.constant 0 : index
      %c0_22 = arith.constant 0 : index
      %48 = vector.load %arg8[%c0_21, %c0_22] : memref<1x1xf32, #tpu.memory_space<vmem>>, vector<1x1xf32>
      %c0_23 = arith.constant 0 : index
      %c0_24 = arith.constant 0 : index
      %49 = vector.load %arg9[%c0_23, %c0_24] : memref<1x1xf32, #tpu.memory_space<vmem>>, vector<1x1xf32>
      %50 = arith.divf %48, %49 : vector<1x1xf32>
      %cst_25 = arith.constant 0.000000e+00 : f32
      %51 = vector.broadcast %cst_25 : f32 to vector<1x1xf32>
      %52 = arith.subf %51, %50 : vector<1x1xf32>
      %c0_26 = arith.constant 0 : index
      %53 = memref.load %arg3[%c0_26] : memref<1xf32, #tpu.memory_space<smem>>
      %54 = vector.broadcast %53 : f32 to vector<1x1xf32>
      %55 = arith.addf %52, %54 : vector<1x1xf32>
      %c0_27 = arith.constant 0 : index
      %c0_28 = arith.constant 0 : index
      %56 = vector.load %arg7[%c0_27, %c0_28] : memref<1x1xf32, #tpu.memory_space<vmem>>, vector<1x1xf32>
      tpu.vector_store %arg7[%c0_27, %c0_28], %55 {strides = array<i32>} : memref<1x1xf32, #tpu.memory_space<vmem>>, vector<1x1xf32>,
    } else {
    }
    return
  }
  func.func @transform_0(%arg0: i32) -> i32 {
    %c0_i32 = arith.constant 0 : i32
    %c0_i32_0 = arith.constant 0 : i32
    return %c0_i32 : i32
  }
  func.func @transform_1(%arg0: i32) -> i32 {
    %c0_i32 = arith.constant 0 : i32
    %c0_i32_0 = arith.constant 0 : i32
    return %c0_i32 : i32
  }
  func.func @transform_2(%arg0: i32) -> i32 {
    %c0_i32 = arith.constant 0 : i32
    %c0_i32_0 = arith.constant 0 : i32
    return %c0_i32 : i32
  }
  func.func @transform_3(%arg0: i32) -> (i32, i32) {
    %c0_i32 = arith.constant 0 : i32
    %c0_i32_0 = arith.constant 0 : i32
    return %arg0, %c0_i32 : i32, i32
  }
  func.func @transform_4(%arg0: i32) -> (i32, i32) {
    %c0_i32 = arith.constant 0 : i32
    %c0_i32_0 = arith.constant 0 : i32
    return %arg0, %c0_i32 : i32, i32
  }
  func.func @transform_5(%arg0: i32) -> (i32, i32) {
    %c0_i32 = arith.constant 0 : i32
    %c0_i32_0 = arith.constant 0 : i32
    return %arg0, %c0_i32 : i32, i32
  }
  func.func @transform_6(%arg0: i32) -> (i32, i32) {
    %c0_i32 = arith.constant 0 : i32
    %c0_i32_0 = arith.constant 0 : i32
    %c0_i32_1 = arith.constant 0 : i32
    return %c0_i32, %c0_i32_0 : i32, i32
  }
}

</mosaic_0001>

<llo_original>
// kernel: tpu_custom_call.1
$region0: #{tpu_custom_call.1}
  #allocation0 [shape = 'u32[]', space=smem, size = 0x4, offset = 0x4, fixed_abs, tag = 'smem constant byte address 0x4 - core index']
  #allocation1 [shape = 'u32[144,128]{1,0:T(1,128)}', space=vmem, size = 0x12000, scoped, tag = 'internal scratch']
  #allocation2 [shape = 'f32[1,1]{1,0:T(1,128)}', space=vmem, size = 0x200, scoped, tag = 'scratch operand']
  #allocation3 [shape = 'f32[1,1]{1,0:T(1,128)}', space=vmem, size = 0x200, scoped, tag = 'scratch operand']
  #allocation4 [shape = 's32[1]{0:T(128)S(6)}', space=smem, size = 0x200, scoped, tag = 'scoped memory for tpu_custom_call.1']
  #allocation5 [shape = 's32[1]{0:T(128)S(6)}', space=smem, size = 0x200, scoped, tag = 'scoped memory for tpu_custom_call.1']
  #allocation6 [shape = 'f32[1]{0:T(128)S(6)}', space=smem, size = 0x200, scoped, tag = 'scoped memory for tpu_custom_call.1']
  %s0 = inlined_call_operand.<no memory space> [shape: s32[1], index: 0, kind: input, shape index: {}]
  %s1 = inlined_call_operand.<no memory space> [shape: s32[1], index: 1, kind: input, shape index: {}]
  %s2 = inlined_call_operand.<no memory space> [shape: f32[1], index: 2, kind: input, shape index: {}]
  %s3 = inlined_call_operand.hbm [shape: s32[16,16], index: 3, kind: input, shape index: {}]
  %s4 = inlined_call_operand.hbm [shape: f32[16,16], index: 4, kind: input, shape index: {}]
  %s5 = inlined_call_operand.vmem [shape: f32[16,16], index: 5, kind: input, shape index: {}]
  %s6 = inlined_call_operand.hbm [shape: f32[1,1], index: 6, kind: output, shape index: {}]
  %s7 = sld [smem:[#allocation0]]
  $region73: #{tpu_custom_call.1} parent=0
    _
  %s9 = ssub.s32 1, %s7
  %s10 = scalar_select 0, %s9, %s7
  %11 = sst [smem:[#allocation4]] %s0
  %12 = sst [smem:[#allocation5]] %s1
  %13 = sst [smem:[#allocation6]] %s2
  $region1: #{tpu_custom_call.1} parent=0
    #allocation7 [shape = 'u8[8192]{0}', space=vmem, size = 0x2000, scoped, tag = 'input window, operand 3']
    #allocation8 [shape = 's32[2]{0}', space=sflag, size = 0x8, scoped, tag = 'scoped memory for tpu_custom_call.1']
    #allocation9 [shape = 's32[2]{0}', space=sflag, size = 0x8, scoped, tag = 'scoped memory for tpu_custom_call.1']
    #allocation10 [shape = 'u8[8192]{0}', space=vmem, size = 0x2000, scoped, tag = 'input window, operand 4']
    #allocation11 [shape = 's32[2]{0}', space=sflag, size = 0x8, scoped, tag = 'scoped memory for tpu_custom_call.1']
    #allocation12 [shape = 'u8[512]{0}', space=vmem, size = 0x400, scoped, tag = 'output window, operand 0, single buffered']
    %14 = vsyncpa [#allocation8], 0
    %s15 = scalar_lea.sflag [#allocation8], 1
    %16 = vsyncpa %s15, 0
    %17 = vsyncpa [#allocation11], 0
    %s18 = scalar_lea.sflag [#allocation11], 1
    %19 = vsyncpa %s18, 0
    %20 = vsyncpa [#allocation9], 0
    loop: start=0, step=1, limit=4
    $region2: #{tpu_custom_call.1} parent=1 // loop_pre_header
      _
    $region3: #{tpu_custom_call.1} parent=1 // loop_header
      %s22 = sphi 0, %s26
      %p23 = scmp.ge.s32.totalorder %s22, 4
      %s30 = sphi 0, %s30
      %s32 = sphi 0, %s30
      %s33 = sphi 0, %s32
      %s47 = sphi 0, %s33
      %s51 = sphi 0, %s51
      %s53 = sphi 0, %s51
      %s54 = sphi 0, %s53
      %s68 = sphi 0, %s54
      %s72 = sphi 0, %s72
      %s74 = sphi 0, %s72
      %s75 = sphi 0, %s74
      %s89 = sphi 0, %s75
      %s95 = sphi 0, %s97
      %s98 = sphi 0, %s95
      %s99 = sphi 0, %s98
      %s115 = sphi 0, %s99
      %s121 = sphi 0, %s123
      %s124 = sphi 0, %s121
      %s125 = sphi 0, %s124
      %s141 = sphi 0, %s125
      %s147 = sphi 0, %s149
      %s150 = sphi 0, %s147
      %s151 = sphi 0, %s150
      %s167 = sphi 0, %s151
      %s171 = sphi 0, %s171
      %s173 = sphi 0, %s171
      %s174 = sphi 0, %s173
      %s188 = sphi 0, %s174
    $region4: #{tpu_custom_call.1} parent=1 // loop_header_branch
      %25 = sbr.rel (%p23) target = $region8
    $region5: #{tpu_custom_call.1} parent=1 // loop_body
      %s27 = ssub.s32 %s22, 1
      %s28 = ssub.s32 %s22, 2
      %s29 = sadd.s32 %s22, 1
      %s31 = sadd.s32 %s30, 1
      %p34 = scmp.eq.s32.totalorder %s22, 1
      %p35 = scmp.ne.s32.totalorder %s30, %s32
      %p36 = scmp.eq.s32.totalorder %s22, 0
      %p37 = por %p35, %p36
      %p38 = scmp.ne.s32.totalorder %s30, %s32
      %p39 = scmp.eq.s32.totalorder %s27, 1
      %p40 = por %p38, %p39
      %p41 = scmp.ne.s32.totalorder %s32, %s33
      %p42 = scmp.eq.s32.totalorder %s27, 0
      %p43 = por %p41, %p42
      %p44 = scmp.ne.s32.totalorder %s32, %s33
      %p45 = scmp.eq.s32.totalorder %s28, 1
      %p46 = por %p44, %p45
      %p48 = scmp.ne.s32.totalorder %s33, %s47
      %p49 = scmp.eq.s32.totalorder %s28, 0
      %p50 = por %p48, %p49
      %s52 = sadd.s32 %s51, 1
      %p55 = scmp.eq.s32.totalorder %s22, 1
      %p56 = scmp.ne.s32.totalorder %s51, %s53
      %p57 = scmp.eq.s32.totalorder %s22, 0
      %p58 = por %p56, %p57
      %p59 = scmp.ne.s32.totalorder %s51, %s53
      %p60 = scmp.eq.s32.totalorder %s27, 1
      %p61 = por %p59, %p60
      %p62 = scmp.ne.s32.totalorder %s53, %s54
      %p63 = scmp.eq.s32.totalorder %s27, 0
      %p64 = por %p62, %p63
      %p65 = scmp.ne.s32.totalorder %s53, %s54
      %p66 = scmp.eq.s32.totalorder %s28, 1
      %p67 = por %p65, %p66
      %p69 = scmp.ne.s32.totalorder %s54, %s68
      %p70 = scmp.eq.s32.totalorder %s28, 0
      %p71 = por %p69, %p70
      %s73 = sadd.s32 %s72, 1
      %p76 = scmp.eq.s32.totalorder %s22, 1
      %p77 = scmp.ne.s32.totalorder %s72, %s74
      %p78 = scmp.eq.s32.totalorder %s22, 0
      %p79 = por %p77, %p78
      %p80 = scmp.ne.s32.totalorder %s72, %s74
      %p81 = scmp.eq.s32.totalorder %s27, 1
      %p82 = por %p80, %p81
      %p83 = scmp.ne.s32.totalorder %s74, %s75
      %p84 = scmp.eq.s32.totalorder %s27, 0
      %p85 = por %p83, %p84
      %p86 = scmp.ne.s32.totalorder %s74, %s75
      %p87 = scmp.eq.s32.totalorder %s28, 1
      %p88 = por %p86, %p87
      %p90 = scmp.ne.s32.totalorder %s75, %s89
      %p91 = scmp.eq.s32.totalorder %s28, 0
      %p92 = por %p90, %p91
      %s93 = ssub.s32 %s22, %s29
      %p94 = scmp.eq.s32.totalorder %s93, 0
      %s96 = sadd.s32 %s95, 1
      %s97 = scalar_select %p94, %s95, %s96
      %p100 = pneg %p94
      %p101 = scmp.eq.s32.totalorder %s22, 1
      %p102 = por %p100, %p101
      %p103 = scmp.ne.s32.totalorder %s95, %s98
      %p104 = scmp.eq.s32.totalorder %s22, 0
      %p105 = por %p103, %p104
      %p106 = scmp.ne.s32.totalorder %s95, %s98
      %p107 = scmp.eq.s32.totalorder %s27, 1
      %p108 = por %p106, %p107
      %p109 = scmp.ne.s32.totalorder %s98, %s99
      %p110 = scmp.eq.s32.totalorder %s27, 0
      %p111 = por %p109, %p110
      %p112 = scmp.ne.s32.totalorder %s98, %s99
      %p113 = scmp.eq.s32.totalorder %s28, 1
      %p114 = por %p112, %p113
      %p116 = scmp.ne.s32.totalorder %s99, %s115
      %p117 = scmp.eq.s32.totalorder %s28, 0
      %p118 = por %p116, %p117
      %s119 = ssub.s32 %s22, %s29
      %p120 = scmp.eq.s32.totalorder %s119, 0
      %s122 = sadd.s32 %s121, 1
      %s123 = scalar_select %p120, %s121, %s122
      %p126 = pneg %p120
      %p127 = scmp.eq.s32.totalorder %s22, 1
      %p128 = por %p126, %p127
      %p129 = scmp.ne.s32.totalorder %s121, %s124
      %p130 = scmp.eq.s32.totalorder %s22, 0
      %p131 = por %p129, %p130
      %p132 = scmp.ne.s32.totalorder %s121, %s124
      %p133 = scmp.eq.s32.totalorder %s27, 1
      %p134 = por %p132, %p133
      %p135 = scmp.ne.s32.totalorder %s124, %s125
      %p136 = scmp.eq.s32.totalorder %s27, 0
      %p137 = por %p135, %p136
      %p138 = scmp.ne.s32.totalorder %s124, %s125
      %p139 = scmp.eq.s32.totalorder %s28, 1
      %p140 = por %p138, %p139
      %p142 = scmp.ne.s32.totalorder %s125, %s141
      %p143 = scmp.eq.s32.totalorder %s28, 0
      %p144 = por %p142, %p143
      %s145 = ssub.s32 %s22, %s29
      %p146 = scmp.eq.s32.totalorder %s145, 0
      %s148 = sadd.s32 %s147, 1
      %s149 = scalar_select %p146, %s147, %s148
      %p152 = pneg %p146
      %p153 = scmp.eq.s32.totalorder %s22, 1
      %p154 = por %p152, %p153
      %p155 = scmp.ne.s32.totalorder %s147, %s150
      %p156 = scmp.eq.s32.totalorder %s22, 0
      %p157 = por %p155, %p156
      %p158 = scmp.ne.s32.totalorder %s147, %s150
      %p159 = scmp.eq.s32.totalorder %s27, 1
      %p160 = por %p158, %p159
      %p161 = scmp.ne.s32.totalorder %s150, %s151
      %p162 = scmp.eq.s32.totalorder %s27, 0
      %p163 = por %p161, %p162
      %p164 = scmp.ne.s32.totalorder %s150, %s151
      %p165 = scmp.eq.s32.totalorder %s28, 1
      %p166 = por %p164, %p165
      %p168 = scmp.ne.s32.totalorder %s151, %s167
      %p169 = scmp.eq.s32.totalorder %s28, 0
      %p170 = por %p168, %p169
      %s172 = sadd.s32 %s171, 1
      %p175 = scmp.eq.s32.totalorder %s22, 1
      %p176 = scmp.ne.s32.totalorder %s171, %s173
      %p177 = scmp.eq.s32.totalorder %s22, 0
      %p178 = por %p176, %p177
      %p179 = scmp.ne.s32.totalorder %s171, %s173
      %p180 = scmp.eq.s32.totalorder %s27, 1
      %p181 = por %p179, %p180
      %p182 = scmp.ne.s32.totalorder %s173, %s174
      %p183 = scmp.eq.s32.totalorder %s27, 0
      %p184 = por %p182, %p183
      %p185 = scmp.ne.s32.totalorder %s173, %s174
      %p186 = scmp.eq.s32.totalorder %s28, 1
      %p187 = por %p185, %p186
      %p189 = scmp.ne.s32.totalorder %s174, %s188
      %p190 = scmp.eq.s32.totalorder %s28, 0
      %p191 = por %p189, %p190
      %p192 = scmp.le.s32.totalorder 1, %s22
      %p193 = scmp.lt.s32.totalorder %s22, 3
      %p194 = pnand %p192, %p193
      %p195 = pneg %p194
      // Predicated region
      $region9: #{tpu_custom_call.1} parent=5 // pred_check
        _
      $region10: #{tpu_custom_call.1} parent=5 // pred_check_branch
        %197 = sbr.rel (%p194) target = $region12
      $region11: #{tpu_custom_call.1} parent=5 // pred_region
        %s198 = ssub.s32 %s22, 1
        // Predicated region
        $region13: #{tpu_custom_call.1} parent=11 // pred_check
          %p199 = pneg %p43
        $region14: #{tpu_custom_call.1} parent=11 // pred_check_branch
          %201 = sbr.rel (%p199) target = $region16
        $region15: #{tpu_custom_call.1} parent=11 // pred_region
          _
        $region16: #{tpu_custom_call.1} parent=11 // pred_fallthru
          _
        // Predicated region
        $region17: #{tpu_custom_call.1} parent=11 // pred_check
          %p202 = pneg %p64
        $region18: #{tpu_custom_call.1} parent=11 // pred_check_branch
          %204 = sbr.rel (%p202) target = $region20
        $region19: #{tpu_custom_call.1} parent=11 // pred_region
          _
        $region20: #{tpu_custom_call.1} parent=11 // pred_fallthru
          _
        // Predicated region
        $region21: #{tpu_custom_call.1} parent=11 // pred_check
          %p205 = pneg %p85
        $region22: #{tpu_custom_call.1} parent=11 // pred_check_branch
          %207 = sbr.rel (%p205) target = $region24
        $region23: #{tpu_custom_call.1} parent=11 // pred_region
          _
        $region24: #{tpu_custom_call.1} parent=11 // pred_fallthru
          _
      $region12: #{tpu_custom_call.1} parent=5 // pred_fallthru
        _
      %p208 = scmp.lt.s32.totalorder %s22, 2
      // Predicated region
      $region25: #{tpu_custom_call.1} parent=5 // pred_check
        %p209 = pneg %p208
      $region26: #{tpu_custom_call.1} parent=5 // pred_check_branch
        %211 = sbr.rel (%p209) target = $region28
      $region27: #{tpu_custom_call.1} parent=5 // pred_region
        // Predicated region
        $region29: #{tpu_custom_call.1} parent=27 // pred_check
          %p212 = pneg %p105
        $region30: #{tpu_custom_call.1} parent=27 // pred_check_branch
          %214 = sbr.rel (%p212) target = $region32
        $region31: #{tpu_custom_call.1} parent=27 // pred_region
          %s215 = sand.u32 %s95, 1
          %s216 = scalar_lea.sflag [#allocation8], %s215
          %s217 = sand.u32 %s95, 1
          %s218 = smul.addr %s217, 8
          %s219 = scalar_lea.vmem [#allocation7], %s218
          %s221 = ssub.s32 128, 128
          %222 = vsyncadd %s216, %s221
          %s223 = smul.addr %s22, 128
          %s224 = scalar_lea.hbm %s3, %s223
          %s226 = sshll.u32 %s219, 4
          %s227 = int_to_ptr.vmem [resolvable:$true] %s226
          %229 = dma.hbm_to_vmem [thread:$0]  %s224, 128, %s227, %s216
        $region32: #{tpu_custom_call.1} parent=27 // pred_fallthru
          _
        // Predicated region
        $region33: #{tpu_custom_call.1} parent=27 // pred_check
          %p230 = pneg %p131
        $region34: #{tpu_custom_call.1} parent=27 // pred_check_branch
          %232 = sbr.rel (%p230) target = $region36
        $region35: #{tpu_custom_call.1} parent=27 // pred_region
          %s233 = sand.u32 %s121, 1
          %s234 = scalar_lea.sflag [#allocation11], %s233
          %s235 = sand.u32 %s121, 1
          %s236 = smul.addr %s235, 8
          %s237 = scalar_lea.vmem [#allocation10], %s236
          %s239 = ssub.s32 128, 128
          %240 = vsyncadd %s234, %s239
          %s241 = smul.addr %s22, 128
          %s242 = scalar_lea.hbm %s4, %s241
          %s244 = sshll.u32 %s237, 4
          %s245 = int_to_ptr.vmem [resolvable:$true] %s244
          %247 = dma.hbm_to_vmem [thread:$0]  %s242, 128, %s245, %s234
        $region36: #{tpu_custom_call.1} parent=27 // pred_fallthru
          _
        // Predicated region
        $region37: #{tpu_custom_call.1} parent=27 // pred_check
          %p248 = pneg %p157
        $region38: #{tpu_custom_call.1} parent=27 // pred_check_branch
          %250 = sbr.rel (%p248) target = $region40
        $region39: #{tpu_custom_call.1} parent=27 // pred_region
          %p251 = scmp.lt.s32.totalorder %s22, 1
          %s252 = scalar_select %p251, %s22, 1
          %s253 = smul.addr %s252, 8
          %s254 = scalar_lea.vmem %s5, %s253
        $region40: #{tpu_custom_call.1} parent=27 // pred_fallthru
          _
      $region28: #{tpu_custom_call.1} parent=5 // pred_fallthru
        _
      %p255 = scmp.le.s32.totalorder 1, %s22
      %p256 = scmp.lt.s32.totalorder %s22, 3
      %p257 = pnand %p255, %p256
      %p258 = pneg %p257
      // Predicated region
      $region41: #{tpu_custom_call.1} parent=5 // pred_check
        _
      $region42: #{tpu_custom_call.1} parent=5 // pred_check_branch
        %260 = sbr.rel (%p257) target = $region44
      $region43: #{tpu_custom_call.1} parent=5 // pred_region
        %s261 = ssub.s32 %s22, 1
        %s262 = sand.u32 %s98, 1
        %s263 = scalar_lea.sflag [#allocation8], %s262
        %s264 = sand.u32 %s98, 1
        %s265 = smul.addr %s264, 8
        %s266 = scalar_lea.vmem [#allocation7], %s265
        // Predicated region
        $region45: #{tpu_custom_call.1} parent=43 // pred_check
          %p267 = pneg %p111
        $region46: #{tpu_custom_call.1} parent=43 // pred_check_branch
          %269 = sbr.rel (%p267) target = $region48
        $region47: #{tpu_custom_call.1} parent=43 // pred_region
          %270 = dma.done %s263, 128
        $region48: #{tpu_custom_call.1} parent=43 // pred_fallthru
          _
        %s271 = sand.u32 %s124, 1
        %s272 = scalar_lea.sflag [#allocation11], %s271
        %s273 = sand.u32 %s124, 1
        %s274 = smul.addr %s273, 8
        %s275 = scalar_lea.vmem [#allocation10], %s274
        // Predicated region
        $region49: #{tpu_custom_call.1} parent=43 // pred_check
          %p276 = pneg %p137
        $region50: #{tpu_custom_call.1} parent=43 // pred_check_branch
          %278 = sbr.rel (%p276) target = $region52
        $region51: #{tpu_custom_call.1} parent=43 // pred_region
          %279 = dma.done %s272, 128
        $region52: #{tpu_custom_call.1} parent=43 // pred_fallthru
          _
        %p280 = pneg %p43
        %p281 = pneg %p40
        %p282 = pneg %p64
        %p283 = pneg %p61
        %p284 = pneg %p85
        %p285 = pneg %p82
        %s286 = sand.u32 %s98, 1
        %s287 = scalar_lea.sflag [#allocation8], %s286
        %s288 = sand.u32 %s98, 1
        %s289 = smul.addr %s288, 8
        %s290 = scalar_lea.vmem [#allocation7], %s289
        %p291 = pneg %p111
        %p292 = pneg %p108
        %s293 = sand.u32 %s124, 1
        %s294 = scalar_lea.sflag [#allocation11], %s293
        %s295 = sand.u32 %s124, 1
        %s296 = smul.addr %s295, 8
        %s297 = scalar_lea.vmem [#allocation10], %s296
        %p298 = pneg %p137
        %p299 = pneg %p134
        %p300 = scmp.lt.s32.totalorder %s27, 1
        %s301 = scalar_select %p300, %s27, 1
        %s302 = smul.addr %s301, 8
        %s303 = scalar_lea.vmem %s5, %s302
        %p304 = pneg %p163
        %p305 = pneg %p160
        %p306 = pneg %p184
        %p307 = pneg %p181
        %p308 = scmp.lt.s32.totalorder %s27, 1
        %s309 = scalar_select %p308, %s27, 1
        %s310 = smul.addr %s309, 8
        %s311 = scalar_lea.vmem %s5, %s310
        %p312 = scmp.eq.s32.totalorder %s27, 0
        // Predicated region
        $region53: #{tpu_custom_call.1} parent=43 // pred_check
          %p313 = pneg %p312
        $region54: #{tpu_custom_call.1} parent=43 // pred_check_branch
          %315 = sbr.rel (%p313) target = $region56
        $region55: #{tpu_custom_call.1} parent=43 // pred_region
          %vm316 = vcmask 0
          %317 = vst.msk [vmem:[#allocation2] sm:$0x1] %vm316, 0.0
          %318 = vst.msk [vmem:[#allocation3] sm:$0x1] %vm316, 0.0
        $region56: #{tpu_custom_call.1} parent=43 // pred_fallthru
          _
        %v319 = vld [vmem:[%s266] sm:$0xff]
        %v320 = vld [vmem:[%s275] sm:$0xff]
        %v321 = vld [vmem:[%s311] sm:$0xff]
        %v322 = vlaneseq
        %v323 = vand.u32 %v322, 127
        %s324 = sld [smem:[#allocation4]]
        %v325 = vstv %s324
        %vm326 = vcmp.eq.s32.totalorder %v319, %v325
        %v327 = vsel %vm326, %v323, 16
        %vm328 = vcmask 130048
        %v329 = vsel %vm328, %v327, 2147483647
        %v330 = vand.u32 %v329, 65535
        %v331 = vshra.s32 %v329, 16
        %v332 = vcvt.s32.f32 %v330
        %v333 = vcvt.s32.f32 %v331
        %334 = vmin.xlane.f32.xlu0 %v333
        %v335 = vpop.xlane.xlu0 %334
        %vm336 = vcmp.eq.f32.partialorder %v333, %v335
        %v337 = vsel %vm336, %v332, inf
        %338 = vmin.xlane.f32.xlu0 %v337
        %v339 = vpop.xlane.xlu0 %338
        %v340 = vcvt.f32.s32 %v339
        %v341 = vcvt.f32.s32 %v335
        %v342 = vshll.u32 %v341, 16
        %v343 = vadd.s32 %v342, %v340
        %s344 = smul.u32 %s27, 8
        %v345 = vlaneseq
        %v346 = vshrl.u32 %v345, 7
        %v347 = vstv %s344
        %v348 = vadd.s32 %v347, %v346
        %vm349 = vcmp.le.s32.totalorder %v323, %v343
        %s350 = sld [smem:[#allocation5]]
        %v351 = vstv %s350
        %vm352 = vcmp.lt.s32.totalorder %v348, %v351
        %vm353 = vmand %vm349, %vm352
        %v354 = vsel %vm353, 1.0, 0.0
        %v355 = vld [vmem:[#allocation2] sm:$0x1]
        %v356 = vmul.f32 %v320, %v321
        %v357 = vmul.f32 %v356, %v354
        %v358 = vsel %vm328, %v357, 0.0
        %359 = vadd.xlane.f32.xlu0 %v358
        %v360 = vpop.xlane.xlu0 %359
        %v361 = vrot.slane %v360, 4
        %v362 = vadd.f32 %v360, %v361
        %v363 = vrot.slane %v362, 2
        %v364 = vadd.f32 %v362, %v363
        %v365 = vrot.slane %v364, 1
        %v366 = vadd.f32 %v364, %v365
        %s367 = vtos %v366
        %v368 = vstv %s367
        %v369 = vadd.f32 %v355, %v368
        %vm370 = vcmask 0
        %371 = vst.msk [vmem:[#allocation2] sm:$0x1] %vm370, %v369
        %v372 = vld [vmem:[#allocation3] sm:$0x1]
        %v373 = vsel %vm328, %v354, 0.0
        %374 = vadd.xlane.f32.xlu0 %v373
        %v375 = vpop.xlane.xlu0 %374
        %v376 = vrot.slane %v375, 4
        %v377 = vadd.f32 %v375, %v376
        %v378 = vrot.slane %v377, 2
        %v379 = vadd.f32 %v377, %v378
        %v380 = vrot.slane %v379, 1
        %v381 = vadd.f32 %v379, %v380
        %s382 = vtos %v381
        %v383 = vstv %s382
        %v384 = vadd.f32 %v372, %v383
        %385 = vst.msk [vmem:[#allocation3] sm:$0x1] %vm370, %v384
        %p386 = scmp.eq.s32.totalorder %s27, 1
        // Predicated region
        $region57: #{tpu_custom_call.1} parent=43 // pred_check
          %p387 = pneg %p386
        $region58: #{tpu_custom_call.1} parent=43 // pred_check_branch
          %389 = sbr.rel (%p387) target = $region60
        $region59: #{tpu_custom_call.1} parent=43 // pred_region
          %v390 = vld [vmem:[#allocation2] sm:$0x1]
          %v391 = vld [vmem:[#allocation3] sm:$0x1]
          %v392 = vrcp.pop %v391
          %v393 = vmul.f32 %v390, %v392
          %v394 = vsub.f32 0.0, %v393
          %s395 = sld [smem:[#allocation6]]
          %v396 = vstv %s395
          %v397 = vadd.f32 %v394, %v396
          %398 = vst.msk [vmem:[#allocation12] sm:$0x1] %vm370, %v397
        $region60: #{tpu_custom_call.1} parent=43 // pred_fallthru
          _
        // Predicated region
        $region61: #{tpu_custom_call.1} parent=43 // pred_check
          %p399 = pneg %p181
        $region62: #{tpu_custom_call.1} parent=43 // pred_check_branch
          %401 = sbr.rel (%p399) target = $region64
        $region63: #{tpu_custom_call.1} parent=43 // pred_region
          %s403 = ssub.s32 16, 16
          %404 = vsyncadd [#allocation9], %s403
          %s406 = sshll.u32 [#allocation12], 4
          %s407 = int_to_ptr.vmem [resolvable:$true] %s406
          %409 = dma.vmem_to_hbm [thread:$0]  %s407, 16, %s6, [#allocation9]
        $region64: #{tpu_custom_call.1} parent=43 // pred_fallthru
          _
        // Predicated region
        $region65: #{tpu_custom_call.1} parent=43 // pred_check
          %p410 = pneg %p181
        $region66: #{tpu_custom_call.1} parent=43 // pred_check_branch
          %412 = sbr.rel (%p410) target = $region68
        $region67: #{tpu_custom_call.1} parent=43 // pred_region
          %413 = dma.done [#allocation9], 16
        $region68: #{tpu_custom_call.1} parent=43 // pred_fallthru
          _
      $region44: #{tpu_custom_call.1} parent=5 // pred_fallthru
        _
      %p414 = scmp.le.s32.totalorder 2, %s22
      // Predicated region
      $region69: #{tpu_custom_call.1} parent=5 // pred_check
        %p415 = pneg %p414
      $region70: #{tpu_custom_call.1} parent=5 // pred_check_branch
        %417 = sbr.rel (%p415) target = $region72
      $region71: #{tpu_custom_call.1} parent=5 // pred_region
        %s418 = ssub.s32 %s22, 2
      $region72: #{tpu_custom_call.1} parent=5 // pred_fallthru
        _
    $region6: #{tpu_custom_call.1} parent=1 // loop_footer
      %s26 = sadd.s32 1, %s22
    $region7: #{tpu_custom_call.1} parent=1 // loop_footer_branch
      %21 = sbr.rel target = $region3
    $region8: #{tpu_custom_call.1} parent=1 // loop_exit
      _
    %419 = vsyncpa [#allocation8], 1
    %s420 = scalar_lea.sflag [#allocation8], 1
    %421 = vsyncpa %s420, 1
    %422 = vsyncpa [#allocation11], 1
    %s423 = scalar_lea.sflag [#allocation11], 1
    %424 = vsyncpa %s423, 1
    %425 = vsyncpa [#allocation9], 1
    %s426 = scalar_lea.sflag [#allocation9], 1
    %427 = vsyncpa %s426, 1

</llo_original>
